<compile_context>
chip_gen: v7x
topology: tpu7x:2x2x1
jax: 0.10.0
libtpu: 0.0.40
codegen_flags: <defaults>
</compile_context>

<pallas_src>
from functools import partial

import jax
import jax.numpy as jnp
from jax import lax
from jax.experimental import pallas as pl
from jax.experimental.pallas import tpu as pltpu

HIDDEN = 256
BN_EPS = 1e-5
LANE = 128


def _round_up(n, m):
    return ((n + m - 1) // m) * m


def _bn_relu(h, gamma, beta, inv_b):
    """Training-mode BatchNorm1d + ReLU on a (B, F) f32 activation.

    Stats via cross-sublane reductions (XLU slot — MXU/VPU stay free); gamma is
    fused into the rsqrt scale so the (B, F) tensor is touched only once.
    """
    sums = jnp.sum(h, axis=0, keepdims=True)          # (1, F)
    sumsq = jnp.sum(h * h, axis=0, keepdims=True)     # (1, F)
    mu = sums * inv_b
    var = jnp.maximum(sumsq * inv_b - mu * mu, 0.0)   # biased var, clamped (f32 cancellation)
    scale = gamma * lax.rsqrt(var + BN_EPS)           # rsqrt rides the EUP slot
    shift = beta - mu * scale
    return jnp.maximum(h * scale + shift, 0.0)


def mlp_kernel(x_ref, w1_ref, w23_ref, w4_ref, bn_ref, b4_ref, o_ref):
    B = x_ref.shape[0]
    inv_b = jnp.float32(1.0 / B)

    bn = bn_ref[...]           # (8, 256) f32: rows = [g1, be1, g2, be2, g3, be3, 0, 0]
    x = x_ref[...]             # (B, n_in_p) bf16, pre-cast in the wrapper

    # fc1 -> bn1 -> relu  (b1 dropped: constant offsets cancel under batch-mean subtraction)
    h = jnp.dot(x, w1_ref[...], preferred_element_type=jnp.float32)
    h = _bn_relu(h, bn[0:1], bn[1:2], inv_b)

    # fc2 -> bn2 -> relu
    h = jnp.dot(h.astype(jnp.bfloat16), w23_ref[0], preferred_element_type=jnp.float32)
    h = _bn_relu(h, bn[2:3], bn[3:4], inv_b)

    # fc3 -> bn3 -> relu
    h = jnp.dot(h.astype(jnp.bfloat16), w23_ref[1], preferred_element_type=jnp.float32)
    h = _bn_relu(h, bn[4:5], bn[5:6], inv_b)

    # fc4 (no activation); b4 does matter.
    out = jnp.dot(h.astype(jnp.bfloat16), w4_ref[...], preferred_element_type=jnp.float32)
    o_ref[...] = (out + b4_ref[...]).astype(o_ref.dtype)   # lane-dense unmasked store


def prepare_params(params, n_in, n_out):
    """One-time parameter prep: lane padding, bf16 casts, operand packing.

    Done once (outside the hot path) so the per-call forward is a single dispatch.
    """
    n_in_p = _round_up(n_in, LANE)
    n_out_p = _round_up(n_out, LANE)
    w1_p = jnp.pad(params["w1"], ((0, n_in_p - n_in), (0, 0))).astype(jnp.bfloat16)
    w23 = jnp.stack([params["w2"], params["w3"]]).astype(jnp.bfloat16)          # (2, 256, 256)
    w4_p = jnp.pad(params["w4"], ((0, 0), (0, n_out_p - n_out))).astype(jnp.bfloat16)
    b4_p = jnp.pad(params["b4"], ((0, 0), (0, n_out_p - n_out)))                # f32
    bn = jnp.concatenate(
        [params["g1"], params["be1"],
         params["g2"], params["be2"],
         params["g3"], params["be3"],
         jnp.zeros((2, HIDDEN), jnp.float32)],
        axis=0,
    )                                                                            # (8, 256)
    return dict(w1=w1_p, w23=w23, w4=w4_p, b4=b4_p, bn=bn)


@partial(jax.jit, static_argnames=("n_out",))
def mlp_forward(x, prepped, n_out):
    """Fused MLP forward pass in one Pallas kernel invocation (jitted).

    Everything fits in VMEM at these sizes, so no grid is needed: every operand is
    a full-array block. Weight preprocessing lives in prepare_params(); only the
    per-call x pad/cast happens here (fused into the jitted graph).
    """
    B, n_in = x.shape
    n_in_p = prepped["w1"].shape[0]
    n_out_p = prepped["w4"].shape[1]
    x_p = jnp.pad(x, ((0, 0), (0, n_in_p - n_in))).astype(jnp.bfloat16)

    vmem = pl.BlockSpec(memory_space=pltpu.MemorySpace.VMEM)
    out_p = pl.pallas_call(
        mlp_kernel,
        out_shape=jax.ShapeDtypeStruct((B, n_out_p), jnp.float32),
        in_specs=[vmem] * 6,
        out_specs=vmem,
    )(x_p, prepped["w1"], prepped["w23"], prepped["w4"], prepped["bn"], prepped["b4"])
    # TODO(synk): for large B, add a batch-tile grid axis (dimension_semantics=
    # ("parallel",)) with two-pass BN stats accumulation, weight BlockSpecs held
    # resident, and tiles sized against v7x's 64 MiB VMEM.
    return out_p[:, :n_out]


def init_params(key, n_in, n_out):
    """Deterministic init mirroring PyTorch defaults.

    Linear: U(-1/sqrt(fan_in), 1/sqrt(fan_in)) for weight and bias.
    BatchNorm1d: gamma = 1, beta = 0. Weights stored as (in, out).
    b1..b3 are kept (the f32 reference uses them) but are not passed to the
    kernel since training-mode BN cancels them exactly.
    """
    def linear(k, fan_in, fan_out):
        kw, kb = jax.random.split(k)
        bound = 1.0 / jnp.sqrt(float(fan_in))
        w = jax.random.uniform(kw, (fan_in, fan_out), jnp.float32, -bound, bound)
        b = jax.random.uniform(kb, (1, fan_out), jnp.float32, -bound, bound)
        return w, b

    k1, k2, k3, k4 = jax.random.split(key, 4)
    w1, b1 = linear(k1, n_in, HIDDEN)
    w2, b2 = linear(k2, HIDDEN, HIDDEN)
    w3, b3 = linear(k3, HIDDEN, HIDDEN)
    w4, b4 = linear(k4, HIDDEN, n_out)
    ones = jnp.ones((1, HIDDEN), jnp.float32)
    zeros = jnp.zeros((1, HIDDEN), jnp.float32)
    return dict(
        w1=w1, b1=b1, g1=ones, be1=zeros,
        w2=w2, b2=b2, g2=ones, be2=zeros,
        w3=w3, b3=b3, g3=ones, be3=zeros,
        w4=w4, b4=b4,
    )


def mlp_reference_f32(x, p):
    """Plain-JAX f32 reference matching the PyTorch forward (training-mode BN)."""
    def bn_relu(h, g, be):
        mu = jnp.mean(h, axis=0, keepdims=True)
        var = jnp.mean((h - mu) ** 2, axis=0, keepdims=True)
        return jnp.maximum((h - mu) / jnp.sqrt(var + BN_EPS) * g + be, 0.0)

    h = bn_relu(x @ p["w1"] + p["b1"], p["g1"], p["be1"])
    h = bn_relu(h @ p["w2"] + p["b2"], p["g2"], p["be2"])
    h = bn_relu(h @ p["w3"] + p["b3"], p["g3"], p["be3"])
    return h @ p["w4"] + p["b4"]


def mlp_reference_mixed(x, p):
    """Plain-JAX mirror of the kernel's mixed-precision algorithm (tight check)."""
    def dot_bf16(a, w):
        return jnp.dot(a.astype(jnp.bfloat16), w.astype(jnp.bfloat16),
                       preferred_element_type=jnp.float32)

    def bn_relu(h, g, be):
        mu = jnp.mean(h, axis=0, keepdims=True)
        var = jnp.maximum(jnp.mean(h * h, axis=0, keepdims=True) - mu * mu, 0.0)
        scale = g * lax.rsqrt(var + BN_EPS)
        return jnp.maximum(h * scale + (be - mu * scale), 0.0)

    h = bn_relu(dot_bf16(x, p["w1"]), p["g1"], p["be1"])
    h = bn_relu(dot_bf16(h, p["w2"]), p["g2"], p["be2"])
    h = bn_relu(dot_bf16(h, p["w3"]), p["g3"], p["be3"])
    return dot_bf16(h, p["w4"]) + p["b4"]


if __name__ == "__main__":
    B, N_IN, N_OUT = 8, 32, 10

    key = jax.random.PRNGKey(0)
    kx, kp = jax.random.split(key)
    x = jax.random.normal(kx, (B, N_IN), jnp.float32)
    params = init_params(kp, N_IN, N_OUT)
    prepped = prepare_params(params, N_IN, N_OUT)     # one-time weight prep (not per call)

    out = jax.block_until_ready(mlp_forward(x, prepped, N_OUT))
    assert out.shape == (B, N_OUT)
    assert jnp.all(jnp.isfinite(out)), "non-finite output"

    ref_mixed = mlp_reference_mixed(x, params)   # same bf16-matmul algorithm
    ref_f32 = mlp_reference_f32(x, params)       # exact PyTorch-semantics f32 reference
    assert jnp.allclose(out, ref_mixed, atol=5e-3, rtol=5e-3), "mismatch vs mixed-precision reference"
    assert jnp.allclose(out, ref_f32, atol=5e-2, rtol=5e-2), "mismatch vs f32 reference"

    print("KERNEL_OK")
</pallas_src>

<mosaic_0001>
module attributes {stable_mosaic.version = 11 : i64} {
  func.func @mlp_kernel(%arg0: memref<8x128xbf16, #tpu.memory_space<vmem>>, %arg1: memref<128x256xbf16, #tpu.memory_space<vmem>>, %arg2: memref<2x256x256xbf16, #tpu.memory_space<vmem>>, %arg3: memref<256x128xbf16, #tpu.memory_space<vmem>>, %arg4: memref<8x256xf32, #tpu.memory_space<vmem>>, %arg5: memref<1x128xf32, #tpu.memory_space<vmem>>, %arg6: memref<8x128xf32, #tpu.memory_space<vmem>>) attributes {dimension_semantics = [], scalar_prefetch = 0 : i64, scratch_operands = 0 : i64, tpu.core_type = #tpu.core_type<tc>} {
    %c0 = arith.constant 0 : index
    %c0_0 = arith.constant 0 : index
    %0 = vector.load %arg4[%c0, %c0_0] : memref<8x256xf32, #tpu.memory_space<vmem>>, vector<8x256xf32>
    %c0_1 = arith.constant 0 : index
    %c0_2 = arith.constant 0 : index
    %1 = vector.load %arg0[%c0_1, %c0_2] : memref<8x128xbf16, #tpu.memory_space<vmem>>, vector<8x128xbf16>
    %c0_3 = arith.constant 0 : index
    %c0_4 = arith.constant 0 : index
    %2 = vector.load %arg1[%c0_3, %c0_4] : memref<128x256xbf16, #tpu.memory_space<vmem>>, vector<128x256xbf16>
    %cst = arith.constant dense<0.000000e+00> : vector<8x256xf32>
    %3 = tpu.matmul %1, %2, %cst {dimension_numbers = #tpu.dot_dimension_numbers<[1], [0], [0], [1], [0, 0, 1, 1], [], []>} : vector<8x128xbf16>, vector<128x256xbf16>, vector<8x256xf32> -> vector<8x256xf32>
    %4 = vector.extract_strided_slice %0 {offsets = [0, 0], sizes = [1, 256], strides = [1, 1]} : vector<8x256xf32> to vector<1x256xf32>
    %5 = vector.extract_strided_slice %0 {offsets = [1, 0], sizes = [1, 256], strides = [1, 1]} : vector<8x256xf32> to vector<1x256xf32>
    %cst_5 = arith.constant dense<0.000000e+00> : vector<256xf32>
    %6 = vector.multi_reduction <add>, %3, %cst_5 [0] : vector<8x256xf32> to vector<256xf32>
    %7 = vector.shape_cast %6 : vector<256xf32> to vector<1x256xf32>
    %8 = arith.mulf %3, %3 : vector<8x256xf32>
    %cst_6 = arith.constant dense<0.000000e+00> : vector<256xf32>
    %9 = vector.multi_reduction <add>, %8, %cst_6 [0] : vector<8x256xf32> to vector<256xf32>
    %10 = vector.shape_cast %9 : vector<256xf32> to vector<1x256xf32>
    %cst_7 = arith.constant 1.250000e-01 : f32
    %11 = vector.broadcast %cst_7 : f32 to vector<1x256xf32>
    %12 = arith.mulf %7, %11 : vector<1x256xf32>
    %cst_8 = arith.constant 1.250000e-01 : f32
    %13 = vector.broadcast %cst_8 : f32 to vector<1x256xf32>
    %14 = arith.mulf %10, %13 : vector<1x256xf32>
    %15 = arith.mulf %12, %12 : vector<1x256xf32>
    %16 = arith.subf %14, %15 : vector<1x256xf32>
    %cst_9 = arith.constant 0.000000e+00 : f32
    %17 = vector.broadcast %cst_9 : f32 to vector<1x256xf32>
    %18 = arith.maximumf %16, %17 : vector<1x256xf32>
    %cst_10 = arith.constant 9.99999974E-6 : f32
    %19 = vector.broadcast %cst_10 : f32 to vector<1x256xf32>
    %20 = arith.addf %18, %19 : vector<1x256xf32>
    %21 = math.rsqrt %20 : vector<1x256xf32>
    %22 = arith.mulf %4, %21 : vector<1x256xf32>
    %23 = arith.mulf %12, %22 : vector<1x256xf32>
    %24 = arith.subf %5, %23 : vector<1x256xf32>
    %25 = vector.broadcast %22 : vector<1x256xf32> to vector<8x256xf32>
    %26 = arith.mulf %3, %25 : vector<8x256xf32>
    %27 = vector.broadcast %24 : vector<1x256xf32> to vector<8x256xf32>
    %28 = arith.addf %26, %27 : vector<8x256xf32>
    %cst_11 = arith.constant 0.000000e+00 : f32
    %29 = vector.broadcast %cst_11 : f32 to vector<8x256xf32>
    %30 = arith.maximumf %28, %29 : vector<8x256xf32>
    %31 = arith.truncf %30 : vector<8x256xf32> to vector<8x256xbf16>
    %c0_12 = arith.constant 0 : index
    %c0_13 = arith.constant 0 : index
    %c0_14 = arith.constant 0 : index
    %32 = vector.load %arg2[%c0_12, %c0_13, %c0_14] : memref<2x256x256xbf16, #tpu.memory_space<vmem>>, vector<1x256x256xbf16>
    %33 = vector.shape_cast %32 : vector<1x256x256xbf16> to vector<256x256xbf16>
    %cst_15 = arith.constant dense<0.000000e+00> : vector<8x256xf32>
    %34 = tpu.matmul %31, %33, %cst_15 {dimension_numbers = #tpu.dot_dimension_numbers<[1], [0], [0], [1], [0, 0, 1, 1], [], []>} : vector<8x256xbf16>, vector<256x256xbf16>, vector<8x256xf32> -> vector<8x256xf32>
    %35 = vector.extract_strided_slice %0 {offsets = [2, 0], sizes = [1, 256], strides = [1, 1]} : vector<8x256xf32> to vector<1x256xf32>
    %36 = vector.extract_strided_slice %0 {offsets = [3, 0], sizes = [1, 256], strides = [1, 1]} : vector<8x256xf32> to vector<1x256xf32>
    %cst_16 = arith.constant dense<0.000000e+00> : vector<256xf32>
    %37 = vector.multi_reduction <add>, %34, %cst_16 [0] : vector<8x256xf32> to vector<256xf32>
    %38 = vector.shape_cast %37 : vector<256xf32> to vector<1x256xf32>
    %39 = arith.mulf %34, %34 : vector<8x256xf32>
    %cst_17 = arith.constant dense<0.000000e+00> : vector<256xf32>
    %40 = vector.multi_reduction <add>, %39, %cst_17 [0] : vector<8x256xf32> to vector<256xf32>
    %41 = vector.shape_cast %40 : vector<256xf32> to vector<1x256xf32>
    %cst_18 = arith.constant 1.250000e-01 : f32
    %42 = vector.broadcast %cst_18 : f32 to vector<1x256xf32>
    %43 = arith.mulf %38, %42 : vector<1x256xf32>
    %cst_19 = arith.constant 1.250000e-01 : f32
    %44 = vector.broadcast %cst_19 : f32 to vector<1x256xf32>
    %45 = arith.mulf %41, %44 : vector<1x256xf32>
    %46 = arith.mulf %43, %43 : vector<1x256xf32>
    %47 = arith.subf %45, %46 : vector<1x256xf32>
    %cst_20 = arith.constant 0.000000e+00 : f32
    %48 = vector.broadcast %cst_20 : f32 to vector<1x256xf32>
    %49 = arith.maximumf %47, %48 : vector<1x256xf32>
    %cst_21 = arith.constant 9.99999974E-6 : f32
    %50 = vector.broadcast %cst_21 : f32 to vector<1x256xf32>
    %51 = arith.addf %49, %50 : vector<1x256xf32>
    %52 = math.rsqrt %51 : vector<1x256xf32>
    %53 = arith.mulf %35, %52 : vector<1x256xf32>
    %54 = arith.mulf %43, %53 : vector<1x256xf32>
    %55 = arith.subf %36, %54 : vector<1x256xf32>
    %56 = vector.broadcast %53 : vector<1x256xf32> to vector<8x256xf32>
    %57 = arith.mulf %34, %56 : vector<8x256xf32>
    %58 = vector.broadcast %55 : vector<1x256xf32> to vector<8x256xf32>
    %59 = arith.addf %57, %58 : vector<8x256xf32>
    %cst_22 = arith.constant 0.000000e+00 : f32
    %60 = vector.broadcast %cst_22 : f32 to vector<8x256xf32>
    %61 = arith.maximumf %59, %60 : vector<8x256xf32>
    %62 = arith.truncf %61 : vector<8x256xf32> to vector<8x256xbf16>
    %c1 = arith.constant 1 : index
    %c0_23 = arith.constant 0 : index
    %c0_24 = arith.constant 0 : index
    %63 = vector.load %arg2[%c1, %c0_23, %c0_24] : memref<2x256x256xbf16, #tpu.memory_space<vmem>>, vector<1x256x256xbf16>
    %64 = vector.shape_cast %63 : vector<1x256x256xbf16> to vector<256x256xbf16>
    %cst_25 = arith.constant dense<0.000000e+00> : vector<8x256xf32>
    %65 = tpu.matmul %62, %64, %cst_25 {dimension_numbers = #tpu.dot_dimension_numbers<[1], [0], [0], [1], [0, 0, 1, 1], [], []>} : vector<8x256xbf16>, vector<256x256xbf16>, vector<8x256xf32> -> vector<8x256xf32>
    %66 = vector.extract_strided_slice %0 {offsets = [4, 0], sizes = [1, 256], strides = [1, 1]} : vector<8x256xf32> to vector<1x256xf32>
    %67 = vector.extract_strided_slice %0 {offsets = [5, 0], sizes = [1, 256], strides = [1, 1]} : vector<8x256xf32> to vector<1x256xf32>
    %cst_26 = arith.constant dense<0.000000e+00> : vector<256xf32>
    %68 = vector.multi_reduction <add>, %65, %cst_26 [0] : vector<8x256xf32> to vector<256xf32>
    %69 = vector.shape_cast %68 : vector<256xf32> to vector<1x256xf32>
    %70 = arith.mulf %65, %65 : vector<8x256xf32>
    %cst_27 = arith.constant dense<0.000000e+00> : vector<256xf32>
    %71 = vector.multi_reduction <add>, %70, %cst_27 [0] : vector<8x256xf32> to vector<256xf32>
    %72 = vector.shape_cast %71 : vector<256xf32> to vector<1x256xf32>
    %cst_28 = arith.constant 1.250000e-01 : f32
    %73 = vector.broadcast %cst_28 : f32 to vector<1x256xf32>
    %74 = arith.mulf %69, %73 : vector<1x256xf32>
    %cst_29 = arith.constant 1.250000e-01 : f32
    %75 = vector.broadcast %cst_29 : f32 to vector<1x256xf32>
    %76 = arith.mulf %72, %75 : vector<1x256xf32>
    %77 = arith.mulf %74, %74 : vector<1x256xf32>
    %78 = arith.subf %76, %77 : vector<1x256xf32>
    %cst_30 = arith.constant 0.000000e+00 : f32
    %79 = vector.broadcast %cst_30 : f32 to vector<1x256xf32>
    %80 = arith.maximumf %78, %79 : vector<1x256xf32>
    %cst_31 = arith.constant 9.99999974E-6 : f32
    %81 = vector.broadcast %cst_31 : f32 to vector<1x256xf32>
    %82 = arith.addf %80, %81 : vector<1x256xf32>
    %83 = math.rsqrt %82 : vector<1x256xf32>
    %84 = arith.mulf %66, %83 : vector<1x256xf32>
    %85 = arith.mulf %74, %84 : vector<1x256xf32>
    %86 = arith.subf %67, %85 : vector<1x256xf32>
    %87 = vector.broadcast %84 : vector<1x256xf32> to vector<8x256xf32>
    %88 = arith.mulf %65, %87 : vector<8x256xf32>
    %89 = vector.broadcast %86 : vector<1x256xf32> to vector<8x256xf32>
    %90 = arith.addf %88, %89 : vector<8x256xf32>
    %cst_32 = arith.constant 0.000000e+00 : f32
    %91 = vector.broadcast %cst_32 : f32 to vector<8x256xf32>
    %92 = arith.maximumf %90, %91 : vector<8x256xf32>
    %93 = arith.truncf %92 : vector<8x256xf32> to vector<8x256xbf16>
    %c0_33 = arith.constant 0 : index
    %c0_34 = arith.constant 0 : index
    %94 = vector.load %arg3[%c0_33, %c0_34] : memref<256x128xbf16, #tpu.memory_space<vmem>>, vector<256x128xbf16>
    %cst_35 = arith.constant dense<0.000000e+00> : vector<8x128xf32>
    %95 = tpu.matmul %93, %94, %cst_35 {dimension_numbers = #tpu.dot_dimension_numbers<[1], [0], [0], [1], [0, 0, 1, 1], [], []>} : vector<8x256xbf16>, vector<256x128xbf16>, vector<8x128xf32> -> vector<8x128xf32>
    %c0_36 = arith.constant 0 : index
    %c0_37 = arith.constant 0 : index
    %96 = vector.load %arg5[%c0_36, %c0_37] : memref<1x128xf32, #tpu.memory_space<vmem>>, vector<1x128xf32>
    %97 = vector.broadcast %96 : vector<1x128xf32> to vector<8x128xf32>
    %98 = arith.addf %95, %97 : vector<8x128xf32>
    %c0_38 = arith.constant 0 : index
    %c0_39 = arith.constant 0 : index
    %99 = vector.load %arg6[%c0_38, %c0_39] : memref<8x128xf32, #tpu.memory_space<vmem>>, vector<8x128xf32>
    tpu.vector_store %arg6[%c0_38, %c0_39], %98 {strides = array<i32>} : memref<8x128xf32, #tpu.memory_space<vmem>>, vector<8x128xf32>,
    return
  }
}

</mosaic_0001>

<llo_original>
// kernel: mlp_forward.1
$region0: #{mlp_forward.1}
  #allocation0 [shape = 'u32[]', space=smem, size = 0x4, offset = 0x4, fixed_abs, tag = 'smem constant byte address 0x4 - core index']
  #allocation1 [shape = 'u32[144,128]{1,0:T(1,128)}', space=vmem, size = 0x12000, scoped, tag = 'internal scratch']
  %s0 = inlined_call_operand.vmem [shape: bf16[8,128], index: 0, kind: input, shape index: {}]
  %s1 = inlined_call_operand.hbm [shape: bf16[128,256], index: 1, kind: input, shape index: {}]
  %s2 = inlined_call_operand.hbm [shape: bf16[2,256,256], index: 2, kind: input, shape index: {}]
  %s3 = inlined_call_operand.hbm [shape: bf16[256,128], index: 3, kind: input, shape index: {}]
  %s4 = inlined_call_operand.vmem [shape: f32[8,256], index: 4, kind: input, shape index: {}]
  %s5 = inlined_call_operand.vmem [shape: f32[1,128], index: 5, kind: input, shape index: {}]
  %s6 = inlined_call_operand.hbm [shape: f32[8,128], index: 6, kind: output, shape index: {}]
  %s7 = sld [smem:[#allocation0]]
  $region46: #{mlp_forward.1} parent=0
    _
  %s9 = ssub.s32 1, %s7
  %s10 = scalar_select 0, %s9, %s7
  $region1: #{mlp_forward.1} parent=0
    #allocation2 [shape = 'u8[65536]{0}', space=vmem, size = 0x10000, scoped, tag = 'input window, operand 1, single buffered']
    #allocation3 [shape = 's32[1]{0}', space=sflag, size = 0x4, scoped, tag = 'scoped memory for mlp_forward.1']
    #allocation4 [shape = 's32[1]{0}', space=sflag, size = 0x4, scoped, tag = 'scoped memory for mlp_forward.1']
    #allocation5 [shape = 'u8[262144]{0}', space=vmem, size = 0x40000, scoped, tag = 'input window, operand 2, single buffered']
    #allocation6 [shape = 's32[1]{0}', space=sflag, size = 0x4, scoped, tag = 'scoped memory for mlp_forward.1']
    #allocation7 [shape = 'u8[65536]{0}', space=vmem, size = 0x10000, scoped, tag = 'input window, operand 3, single buffered']
    #allocation8 [shape = 'u8[4096]{0}', space=vmem, size = 0x1000, scoped, tag = 'output window, operand 0, single buffered']
    %11 = vsyncpa [#allocation3], 0
    %12 = vsyncpa [#allocation6], 0
    %13 = vsyncpa [#allocation4], 0
    // Predicated region
    $region2: #{mlp_forward.1} parent=1 // pred_check
      _
    $region3: #{mlp_forward.1} parent=1 // pred_check_branch
      %15 = sbr.rel (0) target = $region5
    $region4: #{mlp_forward.1} parent=1 // pred_region
      _
    $region5: #{mlp_forward.1} parent=1 // pred_fallthru
      _
    // Predicated region
    $region6: #{mlp_forward.1} parent=1 // pred_check
      _
    $region7: #{mlp_forward.1} parent=1 // pred_check_branch
      %17 = sbr.rel (0) target = $region9
    $region8: #{mlp_forward.1} parent=1 // pred_region
      %s19 = ssub.s32 2048, 2048
      %20 = vsyncadd [#allocation3], %s19
      %s21 = sshll.u32 [#allocation2], 4
      %s22 = int_to_ptr.vmem [resolvable:$true] %s21
      %27 = dma.hbm_to_vmem [thread:$0]  %s1, 2048, %s22, [#allocation3], 128, 128, 8
    $region9: #{mlp_forward.1} parent=1 // pred_fallthru
      _
    // Predicated region
    $region10: #{mlp_forward.1} parent=1 // pred_check
      _
    $region11: #{mlp_forward.1} parent=1 // pred_check_branch
      %29 = sbr.rel (0) target = $region13
    $region12: #{mlp_forward.1} parent=1 // pred_region
      %s31 = ssub.s32 8192, 8192
      %32 = vsyncadd [#allocation6], %s31
      %s33 = sshll.u32 [#allocation5], 4
      %s34 = int_to_ptr.vmem [resolvable:$true] %s33
      %39 = dma.hbm_to_vmem [thread:$0]  %s2, 8192, %s34, [#allocation6], 128, 128, 8
    $region13: #{mlp_forward.1} parent=1 // pred_fallthru
      _
    // Predicated region
    $region14: #{mlp_forward.1} parent=1 // pred_check
      _
    $region15: #{mlp_forward.1} parent=1 // pred_check_branch
      %41 = sbr.rel (0) target = $region17
    $region16: #{mlp_forward.1} parent=1 // pred_region
      %s43 = ssub.s32 2048, 2048
      %44 = vsyncadd [#allocation6], %s43
      %s45 = sshll.u32 [#allocation7], 4
      %s46 = int_to_ptr.vmem [resolvable:$true] %s45
      %51 = dma.hbm_to_vmem [thread:$0]  %s3, 2048, %s46, [#allocation6], 64, 64, 4
    $region17: #{mlp_forward.1} parent=1 // pred_fallthru
      _
    // Predicated region
    $region18: #{mlp_forward.1} parent=1 // pred_check
      _
    $region19: #{mlp_forward.1} parent=1 // pred_check_branch
      %53 = sbr.rel (0) target = $region21
    $region20: #{mlp_forward.1} parent=1 // pred_region
      _
    $region21: #{mlp_forward.1} parent=1 // pred_fallthru
      _
    // Predicated region
    $region22: #{mlp_forward.1} parent=1 // pred_check
      _
    $region23: #{mlp_forward.1} parent=1 // pred_check_branch
      %55 = sbr.rel (0) target = $region25
    $region24: #{mlp_forward.1} parent=1 // pred_region
      _
    $region25: #{mlp_forward.1} parent=1 // pred_fallthru
      _
    // Predicated region
    $region26: #{mlp_forward.1} parent=1 // pred_check
      _
    $region27: #{mlp_forward.1} parent=1 // pred_check_branch
      %57 = sbr.rel (0) target = $region29
    $region28: #{mlp_forward.1} parent=1 // pred_region
      %58 = dma.done [#allocation3], 2048
    $region29: #{mlp_forward.1} parent=1 // pred_fallthru
      _
    // Predicated region
    $region30: #{mlp_forward.1} parent=1 // pred_check
      _
    $region31: #{mlp_forward.1} parent=1 // pred_check_branch
      %60 = sbr.rel (0) target = $region33
    $region32: #{mlp_forward.1} parent=1 // pred_region
      %61 = dma.done [#allocation6], 8192
    $region33: #{mlp_forward.1} parent=1 // pred_fallthru
      _
    // Predicated region
    $region34: #{mlp_forward.1} parent=1 // pred_check
      _
    $region35: #{mlp_forward.1} parent=1 // pred_check_branch
      %63 = sbr.rel (0) target = $region37
    $region36: #{mlp_forward.1} parent=1 // pred_region
      %64 = dma.done [#allocation6], 2048
    $region37: #{mlp_forward.1} parent=1 // pred_fallthru
      _
    %v66 = vld [vmem:[%s4] sm:$0xff]
    %v67 = vld [vmem:[%s4 + $0x8] sm:$0xff]
    %v68 = vld [vmem:[%s0] sm:$0xf]
    %v69 = vld [vmem:[#allocation2] sm:$0xff]
    %v70 = vld [vmem:[#allocation2 + $0x8] sm:$0xff]
    %v71 = vld [vmem:[#allocation2 + $0x10] sm:$0xff]
    %v72 = vld [vmem:[#allocation2 + $0x18] sm:$0xff]
    %v73 = vld [vmem:[#allocation2 + $0x20] sm:$0xff]
    %v74 = vld [vmem:[#allocation2 + $0x28] sm:$0xff]
    %v75 = vld [vmem:[#allocation2 + $0x30] sm:$0xff]
    %v76 = vld [vmem:[#allocation2 + $0x38] sm:$0xff]
    %v77 = vld [vmem:[#allocation2 + $0x40] sm:$0xff]
    %v78 = vld [vmem:[#allocation2 + $0x48] sm:$0xff]
    %v79 = vld [vmem:[#allocation2 + $0x50] sm:$0xff]
    %v80 = vld [vmem:[#allocation2 + $0x58] sm:$0xff]
    %v81 = vld [vmem:[#allocation2 + $0x60] sm:$0xff]
    %v82 = vld [vmem:[#allocation2 + $0x68] sm:$0xff]
    %v83 = vld [vmem:[#allocation2 + $0x70] sm:$0xff]
    %v84 = vld [vmem:[#allocation2 + $0x78] sm:$0xff]
    %v101 = vunpack.c.l.b16 %v69
    %v102 = vunpack.c.h.b16 %v69
    %v103 = vunpack.c.l.b16 %v70
    %v104 = vunpack.c.h.b16 %v70
    %v105 = vunpack.c.l.b16 %v71
    %v106 = vunpack.c.h.b16 %v71
    %v107 = vunpack.c.l.b16 %v72
    %v108 = vunpack.c.h.b16 %v72
    %v109 = vunpack.c.l.b16 %v73
    %v110 = vunpack.c.h.b16 %v73
    %v111 = vunpack.c.l.b16 %v74
    %v112 = vunpack.c.h.b16 %v74
    %v113 = vunpack.c.l.b16 %v75
    %v114 = vunpack.c.h.b16 %v75
    %v115 = vunpack.c.l.b16 %v76
    %v116 = vunpack.c.h.b16 %v76
    %v117 = vunpack.c.l.b16 %v77
    %v118 = vunpack.c.h.b16 %v77
    %v119 = vunpack.c.l.b16 %v78
    %v120 = vunpack.c.h.b16 %v78
    %v121 = vunpack.c.l.b16 %v79
    %v122 = vunpack.c.h.b16 %v79
    %v123 = vunpack.c.l.b16 %v80
    %v124 = vunpack.c.h.b16 %v80
    %v125 = vunpack.c.l.b16 %v81
    %v126 = vunpack.c.h.b16 %v81
    %v127 = vunpack.c.l.b16 %v82
    %v128 = vunpack.c.h.b16 %v82
    %v129 = vunpack.c.l.b16 %v83
    %v130 = vunpack.c.h.b16 %v83
    %v131 = vunpack.c.l.b16 %v84
    %v132 = vunpack.c.h.b16 %v84
    %v133 = vpack.c.b16 %v103, %v101
    %v134 = vpack.c.b16 %v104, %v102
    %v135 = vpack.c.b16 %v107, %v105
    %v136 = vpack.c.b16 %v108, %v106
    %v137 = vpack.c.b16 %v111, %v109
    %v138 = vpack.c.b16 %v112, %v110
    %v139 = vpack.c.b16 %v115, %v113
    %v140 = vpack.c.b16 %v116, %v114
    %v141 = vpack.c.b16 %v119, %v117
    %v142 = vpack.c.b16 %v120, %v118
    %v143 = vpack.c.b16 %v123, %v121
    %v144 = vpack.c.b16 %v124, %v122
    %v145 = vpack.c.b16 %v127, %v125
    %v146 = vpack.c.b16 %v128, %v126
    %v147 = vpack.c.b16 %v131, %v129
    %v148 = vpack.c.b16 %v132, %v130
    %165 = vmatprep.subr.bf16.mxu0 %v134
    %166 = vmatpush1.bf16.msra.mxu0 %v133
    %167 = vmatprep.subr.bf16.mxu0 %v136
    %168 = vmatpush1.bf16.msra.mxu0 %v135
    %169 = vmatprep.subr.bf16.mxu0 %v138
    %170 = vmatpush1.bf16.msra.mxu0 %v137
    %171 = vmatprep.subr.bf16.mxu0 %v140
    %172 = vmatpush1.bf16.msra.mxu0 %v139
    %173 = vmatprep.subr.bf16.mxu0 %v142
    %174 = vmatpush1.bf16.msra.mxu0 %v141
    %175 = vmatprep.subr.bf16.mxu0 %v144
    %176 = vmatpush1.bf16.msra.mxu0 %v143
    %177 = vmatprep.subr.bf16.mxu0 %v146
    %178 = vmatpush1.bf16.msra.mxu0 %v145
    %179 = vmatprep.subr.bf16.mxu0 %v148
    %180 = vmatpush1.bf16.msra.mxu0 %v147
    %181 = vmatprep.subr.bf16.mxu0 0
    %182 = vmatpush1.bf16.msra.mxu0 0
    %183 = vmatprep.subr.bf16.mxu0 0
    %184 = vmatpush1.bf16.msra.mxu0 0
    %185 = vmatprep.subr.bf16.mxu0 0
    %186 = vmatpush1.bf16.msra.mxu0 0
    %187 = vmatprep.subr.bf16.mxu0 0
    %188 = vmatpush1.bf16.msra.mxu0 0
    %189 = vmatprep.subr.bf16.mxu0 0
    %190 = vmatpush1.bf16.msra.mxu0 0
    %191 = vmatprep.subr.bf16.mxu0 0
    %192 = vmatpush1.bf16.msra.mxu0 0
    %193 = vmatprep.subr.bf16.mxu0 0
    %194 = vmatpush1.bf16.msra.mxu0 0
    %195 = vmatprep.subr.bf16.mxu0 0
    %196 = vmatpush1.bf16.msra.mxu0 0
    %197 = vmatprep.mubr.bf16.mxu0 0
    %198 = vmatmul.mubr.bf16.gmra.mrb[0].mxu0 %v68
    %v199 = vpop.f32.mrb[0].mxu0
    %v200 = vadd.f32 0.0, %v199
    %v201 = vpop.f32.mrb[0].mxu0
    %v202 = vadd.f32 0.0, %v201
    %v203 = vpop.f32.mrb[0].mxu0
    %v204 = vpop.f32.mrb[0].mxu0
    %205 = vdwg.mxu0
    %v206 = vrot.slane %v200, 4
    %v207 = vadd.f32 %v200, %v206
    %v208 = vrot.slane %v207, 2
    %v209 = vadd.f32 %v207, %v208
    %v210 = vrot.slane %v209, 1
    %v211 = vadd.f32 %v209, %v210
    %v212 = vrot.slane %v202, 4
    %v213 = vadd.f32 %v202, %v212
    %v214 = vrot.slane %v213, 2
    %v215 = vadd.f32 %v213, %v214
    %v216 = vrot.slane %v215, 1
    %v217 = vadd.f32 %v215, %v216
    %v218 = vmul.f32 %v200, %v200
    %v219 = vmul.f32 %v202, %v202
    %v220 = vrot.slane %v218, 4
    %v221 = vadd.f32 %v218, %v220
    %v222 = vrot.slane %v221, 2
    %v223 = vadd.f32 %v221, %v222
    %v224 = vrot.slane %v223, 1
    %v225 = vadd.f32 %v223, %v224
    %v226 = vrot.slane %v219, 4
    %v227 = vadd.f32 %v219, %v226
    %v228 = vrot.slane %v227, 2
    %v229 = vadd.f32 %v227, %v228
    %v230 = vrot.slane %v229, 1
    %v231 = vadd.f32 %v229, %v230
    %v232 = vmul.f32 %v211, 0.125
    %v233 = vmul.f32 %v217, 0.125
    %v234 = vmul.f32 %v225, 0.125
    %v235 = vmul.f32 %v231, 0.125
    %v236 = vmul.f32 %v232, %v232
    %v237 = vmul.f32 %v233, %v233
    %v238 = vsub.f32 %v234, %v236
    %v239 = vsub.f32 %v235, %v237
    %v240 = vmax.f32 %v238, 0.0
    %v241 = vmax.f32 %v239, 0.0
    %v242 = vadd.f32 %v240, 1e-05
    %v243 = vadd.f32 %v241, 1e-05
    %v244 = vrsqrt.pop %v242
    %v245 = vrsqrt.pop %v243
    %v246 = vmul.f32 %v66, %v244
    %v247 = vmul.f32 %v67, %v245
    %v248 = vmul.f32 %v232, %v246
    %v249 = vmul.f32 %v233, %v247
    %v252 = vrot.slane %v248, 7
    %v253 = vrot.slane %v249, 7
    %v256 = vsub.f32 %v66, %v252
    %v257 = vsub.f32 %v67, %v253
    %v258 = vlaneseq
    %v259 = vshrl.u32 %v258, 7
    %v260 = vsub.s32 0, %v259
    %v261 = vrot.slane %v246, %v260
    %v262 = vlaneseq
    %v263 = vshrl.u32 %v262, 7
    %v264 = vsub.s32 0, %v263
    %v265 = vrot.slane %v247, %v264
    %v266 = vmul.f32 %v200, %v261
    %v267 = vmul.f32 %v202, %v265
    %v268 = vlaneseq
    %v269 = vshrl.u32 %v268, 7
    %v270 = vsub.s32 1, %v269
    %v271 = vrot.slane %v256, %v270
    %v272 = vlaneseq
    %v273 = vshrl.u32 %v272, 7
    %v274 = vsub.s32 1, %v273
    %v275 = vrot.slane %v257, %v274
    %v276 = vadd.f32 %v266, %v271
    %v277 = vadd.f32 %v267, %v275
    %v278 = vmax.f32 %v276, 0.0
    %v279 = vmax.f32 %v277, 0.0
    %v280 = vpack.c.bf16 %v278, %v278
    %v281 = vpack.c.bf16 %v279, %v279
    %v282 = vld [vmem:[#allocation5] sm:$0xff]
    %v283 = vld [vmem:[#allocation5 + $0x8] sm:$0xff]
    %v284 = vld [vmem:[#allocation5 + $0x10] sm:$0xff]
    %v285 = vld [vmem:[#allocation5 + $0x18] sm:$0xff]
    %v286 = vld [vmem:[#allocation5 + $0x20] sm:$0xff]
    %v287 = vld [vmem:[#allocation5 + $0x28] sm:$0xff]
    %v288 = vld [vmem:[#allocation5 + $0x30] sm:$0xff]
    %v289 = vld [vmem:[#allocation5 + $0x38] sm:$0xff]
    %v290 = vld [vmem:[#allocation5 + $0x40] sm:$0xff]
    %v291 = vld [vmem:[#allocation5 + $0x48] sm:$0xff]
    %v292 = vld [vmem:[#allocation5 + $0x50] sm:$0xff]
    %v293 = vld [vmem:[#allocation5 + $0x58] sm:$0xff]
    %v294 = vld [vmem:[#allocation5 + $0x60] sm:$0xff]
    %v295 = vld [vmem:[#allocation5 + $0x68] sm:$0xff]
    %v296 = vld [vmem:[#allocation5 + $0x70] sm:$0xff]
    %v297 = vld [vmem:[#allocation5 + $0x78] sm:$0xff]
    %v298 = vld [vmem:[#allocation5 + $0x80] sm:$0xff]
    %v299 = vld [vmem:[#allocation5 + $0x88] sm:$0xff]
    %v300 = vld [vmem:[#allocation5 + $0x90] sm:$0xff]
    %v301 = vld [vmem:[#allocation5 + $0x98] sm:$0xff]
    %v302 = vld [vmem:[#allocation5 + $0xa0] sm:$0xff]
    %v303 = vld [vmem:[#allocation5 + $0xa8] sm:$0xff]
    %v304 = vld [vmem:[#allocation5 + $0xb0] sm:$0xff]
    %v305 = vld [vmem:[#allocation5 + $0xb8] sm:$0xff]
    %v306 = vld [vmem:[#allocation5 + $0xc0] sm:$0xff]
    %v307 = vld [vmem:[#allocation5 + $0xc8] sm:$0xff]
    %v308 = vld [vmem:[#allocation5 + $0xd0] sm:$0xff]
    %v309 = vld [vmem:[#allocation5 + $0xd8] sm:$0xff]
    %v310 = vld [vmem:[#allocation5 + $0xe0] sm:$0xff]
    %v311 = vld [vmem:[#allocation5 + $0xe8] sm:$0xff]
    %v312 = vld [vmem:[#allocation5 + $0xf0] sm:$0xff]
    %v313 = vld [vmem:[#allocation5 + $0xf8] sm:$0xff]
    %v346 = vunpack.c.l.b16 %v282
    %v347 = vunpack.c.h.b16 %v282
    %v348 = vunpack.c.l.b16 %v283
    %v349 = vunpack.c.h.b16 %v283
    %v350 = vunpack.c.l.b16 %v284
    %v351 = vunpack.c.h.b16 %v284
    %v352 = vunpack.c.l.b16 %v285
    %v353 = vunpack.c.h.b16 %v285
    %v354 = vunpack.c.l.b16 %v286
    %v355 = vunpack.c.h.b16 %v286
    %v356 = vunpack.c.l.b16 %v287
    %v357 = vunpack.c.h.b16 %v287
    %v358 = vunpack.c.l.b16 %v288
    %v359 = vunpack.c.h.b16 %v288
    %v360 = vunpack.c.l.b16 %v289
    %v361 = vunpack.c.h.b16 %v289
    %v362 = vunpack.c.l.b16 %v290
    %v363 = vunpack.c.h.b16 %v290
    %v364 = vunpack.c.l.b16 %v291
    %v365 = vunpack.c.h.b16 %v291
    %v366 = vunpack.c.l.b16 %v292
    %v367 = vunpack.c.h.b16 %v292
    %v368 = vunpack.c.l.b16 %v293
    %v369 = vunpack.c.h.b16 %v293
    %v370 = vunpack.c.l.b16 %v294
    %v371 = vunpack.c.h.b16 %v294
    %v372 = vunpack.c.l.b16 %v295
    %v373 = vunpack.c.h.b16 %v295
    %v374 = vunpack.c.l.b16 %v296
    %v375 = vunpack.c.h.b16 %v296
    %v376 = vunpack.c.l.b16 %v297
    %v377 = vunpack.c.h.b16 %v297
    %v378 = vunpack.c.l.b16 %v298
    %v379 = vunpack.c.h.b16 %v298
    %v380 = vunpack.c.l.b16 %v299
    %v381 = vunpack.c.h.b16 %v299
    %v382 = vunpack.c.l.b16 %v300
    %v383 = vunpack.c.h.b16 %v300
    %v384 = vunpack.c.l.b16 %v301
    %v385 = vunpack.c.h.b16 %v301
    %v386 = vunpack.c.l.b16 %v302
    %v387 = vunpack.c.h.b16 %v302
    %v388 = vunpack.c.l.b16 %v303
    %v389 = vunpack.c.h.b16 %v303
    %v390 = vunpack.c.l.b16 %v304
    %v391 = vunpack.c.h.b16 %v304
    %v392 = vunpack.c.l.b16 %v305
    %v393 = vunpack.c.h.b16 %v305
    %v394 = vunpack.c.l.b16 %v306
    %v395 = vunpack.c.h.b16 %v306
    %v396 = vunpack.c.l.b16 %v307
    %v397 = vunpack.c.h.b16 %v307
    %v398 = vunpack.c.l.b16 %v308
    %v399 = vunpack.c.h.b16 %v308
    %v400 = vunpack.c.l.b16 %v309
    %v401 = vunpack.c.h.b16 %v309
    %v402 = vunpack.c.l.b16 %v310
    %v403 = vunpack.c.h.b16 %v310
    %v404 = vunpack.c.l.b16 %v311
    %v405 = vunpack.c.h.b16 %v311
    %v406 = vunpack.c.l.b16 %v312
    %v407 = vunpack.c.h.b16 %v312
    %v408 = vunpack.c.l.b16 %v313
    %v409 = vunpack.c.h.b16 %v313
    %v410 = vpack.c.b16 %v348, %v346
    %v411 = vpack.c.b16 %v349, %v347
    %v412 = vpack.c.b16 %v352, %v350
    %v413 = vpack.c.b16 %v353, %v351
    %v414 = vpack.c.b16 %v356, %v354
    %v415 = vpack.c.b16 %v357, %v355
    %v416 = vpack.c.b16 %v360, %v358
    %v417 = vpack.c.b16 %v361, %v359
    %v418 = vpack.c.b16 %v364, %v362
    %v419 = vpack.c.b16 %v365, %v363
    %v420 = vpack.c.b16 %v368, %v366
    %v421 = vpack.c.b16 %v369, %v367
    %v422 = vpack.c.b16 %v372, %v370
    %v423 = vpack.c.b16 %v373, %v371
    %v424 = vpack.c.b16 %v376, %v374
    %v425 = vpack.c.b16 %v377, %v375
    %v426 = vpack.c.b16 %v380, %v378
    %v427 = vpack.c.b16 %v381, %v379
    %v428 = vpack.c.b16 %v384, %v382
    %v429 = vpack.c.b16 %v385, %v383
    %v430 = vpack.c.b16 %v388, %v386
    %v431 = vpack.c.b16 %v389, %v387
    %v432 = vpack.c.b16 %v392, %v390
    %v433 = vpack.c.b16 %v393, %v391
    %v434 = vpack.c.b16 %v396, %v394
    %v435 = vpack.c.b16 %v397, %v395
    %v436 = vpack.c.b16 %v400, %v398
    %v437 = vpack.c.b16 %v401, %v399
    %v438 = vpack.c.b16 %v404, %v402
    %v439 = vpack.c.b16 %v405, %v403
    %v440 = vpack.c.b16 %v408, %v406
    %v441 = vpack.c.b16 %v409, %v407
    %474 = vmatprep.subr.bf16.mxu0 %v411
    %475 = vmatpush1.bf16.msra.mxu0 %v410
    %476 = vmatprep.subr.bf16.mxu0 %v413
    %477 = vmatpush1.bf16.msra.mxu0 %v412
    %478 = vmatprep.subr.bf16.mxu0 %v415
    %479 = vmatpush1.bf16.msra.mxu0 %v414
    %480 = vmatprep.subr.bf16.mxu0 %v417
    %481 = vmatpush1.bf16.msra.mxu0 %v416
    %482 = vmatprep.subr.bf16.mxu0 %v419
    %483 = vmatpush1.bf16.msra.mxu0 %v418
    %484 = vmatprep.subr.bf16.mxu0 %v421
    %485 = vmatpush1.bf16.msra.mxu0 %v420
    %486 = vmatprep.subr.bf16.mxu0 %v423
    %487 = vmatpush1.bf16.msra.mxu0 %v422
    %488 = vmatprep.subr.bf16.mxu0 %v425
    %489 = vmatpush1.bf16.msra.mxu0 %v424
    %490 = vmatprep.subr.bf16.mxu0 %v427
    %491 = vmatpush1.bf16.msra.mxu0 %v426
    %492 = vmatprep.subr.bf16.mxu0 %v429
    %493 = vmatpush1.bf16.msra.mxu0 %v428
    %494 = vmatprep.subr.bf16.mxu0 %v431
    %495 = vmatpush1.bf16.msra.mxu0 %v430
    %496 = vmatprep.subr.bf16.mxu0 %v433
    %497 = vmatpush1.bf16.msra.mxu0 %v432
    %498 = vmatprep.subr.bf16.mxu0 %v435
    %499 = vmatpush1.bf16.msra.mxu0 %v434
    %500 = vmatprep.subr.bf16.mxu0 %v437
    %501 = vmatpush1.bf16.msra.mxu0 %v436
    %502 = vmatprep.subr.bf16.mxu0 %v439
    %503 = vmatpush1.bf16.msra.mxu0 %v438
    %504 = vmatprep.subr.bf16.mxu0 %v441
    %505 = vmatpush1.bf16.msra.mxu0 %v440
    %506 = vmatprep.mubr.bf16.mxu0 %v281
    %507 = vmatmul.mubr.bf16.gmra.mrb[0].mxu0 %v280
    %v508 = vpop.f32.mrb[0].mxu0
    %v509 = vadd.f32 0.0, %v508
    %v510 = vpop.f32.mrb[0].mxu0
    %v511 = vadd.f32 0.0, %v510
    %v512 = vpop.f32.mrb[0].mxu0
    %v513 = vpop.f32.mrb[0].mxu0
    %514 = vdwg.mxu0
    %v515 = vrot.slane %v509, 4
    %v516 = vadd.f32 %v509, %v515
    %v517 = vrot.slane %v516, 2
    %v518 = vadd.f32 %v516, %v517
    %v519 = vrot.slane %v518, 1
    %v520 = vadd.f32 %v518, %v519
    %v521 = vrot.slane %v511, 4
    %v522 = vadd.f32 %v511, %v521
    %v523 = vrot.slane %v522, 2
    %v524 = vadd.f32 %v522, %v523
    %v525 = vrot.slane %v524, 1
    %v526 = vadd.f32 %v524, %v525
    %v527 = vmul.f32 %v509, %v509
    %v528 = vmul.f32 %v511, %v511
    %v529 = vrot.slane %v527, 4
    %v530 = vadd.f32 %v527, %v529
    %v531 = vrot.slane %v530, 2
    %v532 = vadd.f32 %v530, %v531
    %v533 = vrot.slane %v532, 1
    %v534 = vadd.f32 %v532, %v533
    %v535 = vrot.slane %v528, 4
    %v536 = vadd.f32 %v528, %v535
    %v537 = vrot.slane %v536, 2
    %v538 = vadd.f32 %v536, %v537
    %v539 = vrot.slane %v538, 1
    %v540 = vadd.f32 %v538, %v539
    %v541 = vmul.f32 %v520, 0.125
    %v542 = vmul.f32 %v526, 0.125
    %v543 = vmul.f32 %v534, 0.125
    %v544 = vmul.f32 %v540, 0.125
    %v545 = vmul.f32 %v541, %v541
    %v546 = vmul.f32 %v542, %v542
    %v547 = vsub.f32 %v543, %v545
    %v548 = vsub.f32 %v544, %v546
    %v549 = vmax.f32 %v547, 0.0
    %v550 = vmax.f32 %v548, 0.0
    %v551 = vadd.f32 %v549, 1e-05
    %v552 = vadd.f32 %v550, 1e-05
    %v553 = vrsqrt.pop %v551
    %v554 = vrsqrt.pop %v552
    %v555 = vmul.f32 %v66, %v553
    %v556 = vmul.f32 %v67, %v554
    %v557 = vmul.f32 %v541, %v555
    %v558 = vmul.f32 %v542, %v556
    %v561 = vrot.slane %v557, 7
    %v562 = vrot.slane %v558, 7
    %v565 = vsub.f32 %v66, %v561
    %v566 = vsub.f32 %v67, %v562
    %v567 = vlaneseq
    %v568 = vshrl.u32 %v567, 7
    %v569 = vsub.s32 2, %v568
    %v570 = vrot.slane %v555, %v569
    %v571 = vlaneseq
    %v572 = vshrl.u32 %v571, 7
    %v573 = vsub.s32 2, %v572
    %v574 = vrot.slane %v556, %v573
    %v575 = vmul.f32 %v509, %v570
    %v576 = vmul.f32 %v511, %v574
    %v577 = vlaneseq
    %v578 = vshrl.u32 %v577, 7
    %v579 = vsub.s32 3, %v578
    %v580 = vrot.slane %v565, %v579
    %v581 = vlaneseq
    %v582 = vshrl.u32 %v581, 7
    %v583 = vsub.s32 3, %v582
    %v584 = vrot.slane %v566, %v583
    %v585 = vadd.f32 %v575, %v580
    %v586 = vadd.f32 %v576, %v584
    %v587 = vmax.f32 %v585, 0.0
    %v588 = vmax.f32 %v586, 0.0
    %v589 = vpack.c.bf16 %v587, %v587
    %v590 = vpack.c.bf16 %v588, %v588
    %s591 = scalar_lea.vmem [#allocation5], 256
    %v592 = vld [vmem:[%s591] sm:$0xff]
    %v593 = vld [vmem:[%s591 + $0x8] sm:$0xff]
    %v594 = vld [vmem:[%s591 + $0x10] sm:$0xff]
    %v595 = vld [vmem:[%s591 + $0x18] sm:$0xff]
    %v596 = vld [vmem:[%s591 + $0x20] sm:$0xff]
    %v597 = vld [vmem:[%s591 + $0x28] sm:$0xff]
    %v598 = vld [vmem:[%s591 + $0x30] sm:$0xff]
    %v599 = vld [vmem:[%s591 + $0x38] sm:$0xff]
    %v600 = vld [vmem:[%s591 + $0x40] sm:$0xff]
    %v601 = vld [vmem:[%s591 + $0x48] sm:$0xff]
    %v602 = vld [vmem:[%s591 + $0x50] sm:$0xff]
    %v603 = vld [vmem:[%s591 + $0x58] sm:$0xff]
    %v604 = vld [vmem:[%s591 + $0x60] sm:$0xff]
    %v605 = vld [vmem:[%s591 + $0x68] sm:$0xff]
    %v606 = vld [vmem:[%s591 + $0x70] sm:$0xff]
    %v607 = vld [vmem:[%s591 + $0x78] sm:$0xff]
    %v608 = vld [vmem:[%s591 + $0x80] sm:$0xff]
    %v609 = vld [vmem:[%s591 + $0x88] sm:$0xff]
    %v610 = vld [vmem:[%s591 + $0x90] sm:$0xff]
    %v611 = vld [vmem:[%s591 + $0x98] sm:$0xff]
    %v612 = vld [vmem:[%s591 + $0xa0] sm:$0xff]
    %v613 = vld [vmem:[%s591 + $0xa8] sm:$0xff]
    %v614 = vld [vmem:[%s591 + $0xb0] sm:$0xff]
    %v615 = vld [vmem:[%s591 + $0xb8] sm:$0xff]
    %v616 = vld [vmem:[%s591 + $0xc0] sm:$0xff]
    %v617 = vld [vmem:[%s591 + $0xc8] sm:$0xff]
    %v618 = vld [vmem:[%s591 + $0xd0] sm:$0xff]
    %v619 = vld [vmem:[%s591 + $0xd8] sm:$0xff]
    %v620 = vld [vmem:[%s591 + $0xe0] sm:$0xff]
    %v621 = vld [vmem:[%s591 + $0xe8] sm:$0xff]
    %v622 = vld [vmem:[%s591 + $0xf0] sm:$0xff]
    %v623 = vld [vmem:[%s591 + $0xf8] sm:$0xff]
    %v656 = vunpack.c.l.b16 %v592
    %v657 = vunpack.c.h.b16 %v592
    %v658 = vunpack.c.l.b16 %v593
    %v659 = vunpack.c.h.b16 %v593
    %v660 = vunpack.c.l.b16 %v594
    %v661 = vunpack.c.h.b16 %v594
    %v662 = vunpack.c.l.b16 %v595
    %v663 = vunpack.c.h.b16 %v595
    %v664 = vunpack.c.l.b16 %v596
    %v665 = vunpack.c.h.b16 %v596
    %v666 = vunpack.c.l.b16 %v597
    %v667 = vunpack.c.h.b16 %v597
    %v668 = vunpack.c.l.b16 %v598
    %v669 = vunpack.c.h.b16 %v598
    %v670 = vunpack.c.l.b16 %v599
    %v671 = vunpack.c.h.b16 %v599
    %v672 = vunpack.c.l.b16 %v600
    %v673 = vunpack.c.h.b16 %v600
    %v674 = vunpack.c.l.b16 %v601
    %v675 = vunpack.c.h.b16 %v601
    %v676 = vunpack.c.l.b16 %v602
    %v677 = vunpack.c.h.b16 %v602
    %v678 = vunpack.c.l.b16 %v603
    %v679 = vunpack.c.h.b16 %v603
    %v680 = vunpack.c.l.b16 %v604
    %v681 = vunpack.c.h.b16 %v604
    %v682 = vunpack.c.l.b16 %v605
    %v683 = vunpack.c.h.b16 %v605
    %v684 = vunpack.c.l.b16 %v606
    %v685 = vunpack.c.h.b16 %v606
    %v686 = vunpack.c.l.b16 %v607
    %v687 = vunpack.c.h.b16 %v607
    %v688 = vunpack.c.l.b16 %v608
    %v689 = vunpack.c.h.b16 %v608
    %v690 = vunpack.c.l.b16 %v609
    %v691 = vunpack.c.h.b16 %v609
    %v692 = vunpack.c.l.b16 %v610
    %v693 = vunpack.c.h.b16 %v610
    %v694 = vunpack.c.l.b16 %v611
    %v695 = vunpack.c.h.b16 %v611
    %v696 = vunpack.c.l.b16 %v612
    %v697 = vunpack.c.h.b16 %v612
    %v698 = vunpack.c.l.b16 %v613
    %v699 = vunpack.c.h.b16 %v613
    %v700 = vunpack.c.l.b16 %v614
    %v701 = vunpack.c.h.b16 %v614
    %v702 = vunpack.c.l.b16 %v615
    %v703 = vunpack.c.h.b16 %v615
    %v704 = vunpack.c.l.b16 %v616
    %v705 = vunpack.c.h.b16 %v616
    %v706 = vunpack.c.l.b16 %v617
    %v707 = vunpack.c.h.b16 %v617
    %v708 = vunpack.c.l.b16 %v618
    %v709 = vunpack.c.h.b16 %v618
    %v710 = vunpack.c.l.b16 %v619
    %v711 = vunpack.c.h.b16 %v619
    %v712 = vunpack.c.l.b16 %v620
    %v713 = vunpack.c.h.b16 %v620
    %v714 = vunpack.c.l.b16 %v621
    %v715 = vunpack.c.h.b16 %v621
    %v716 = vunpack.c.l.b16 %v622
    %v717 = vunpack.c.h.b16 %v622
    %v718 = vunpack.c.l.b16 %v623
    %v719 = vunpack.c.h.b16 %v623
    %v720 = vpack.c.b16 %v658, %v656
    %v721 = vpack.c.b16 %v659, %v657
    %v722 = vpack.c.b16 %v662, %v660
    %v723 = vpack.c.b16 %v663, %v661
    %v724 = vpack.c.b16 %v666, %v664
    %v725 = vpack.c.b16 %v667, %v665
    %v726 = vpack.c.b16 %v670, %v668
    %v727 = vpack.c.b16 %v671, %v669
    %v728 = vpack.c.b16 %v674, %v672
    %v729 = vpack.c.b16 %v675, %v673
    %v730 = vpack.c.b16 %v678, %v676
    %v731 = vpack.c.b16 %v679, %v677
    %v732 = vpack.c.b16 %v682, %v680
    %v733 = vpack.c.b16 %v683, %v681
    %v734 = vpack.c.b16 %v686, %v684
    %v735 = vpack.c.b16 %v687, %v685
    %v736 = vpack.c.b16 %v690, %v688
    %v737 = vpack.c.b16 %v691, %v689
    %v738 = vpack.c.b16 %v694, %v692
    %v739 = vpack.c.b16 %v695, %v693
    %v740 = vpack.c.b16 %v698, %v696
    %v741 = vpack.c.b16 %v699, %v697
    %v742 = vpack.c.b16 %v702, %v700
    %v743 = vpack.c.b16 %v703, %v701
    %v744 = vpack.c.b16 %v706, %v704
    %v745 = vpack.c.b16 %v707, %v705
    %v746 = vpack.c.b16 %v710, %v708
    %v747 = vpack.c.b16 %v711, %v709
    %v748 = vpack.c.b16 %v714, %v712
    %v749 = vpack.c.b16 %v715, %v713
    %v750 = vpack.c.b16 %v718, %v716
    %v751 = vpack.c.b16 %v719, %v717
    %784 = vmatprep.subr.bf16.mxu0 %v721
    %785 = vmatpush1.bf16.msra.mxu0 %v720
    %786 = vmatprep.subr.bf16.mxu0 %v723
    %787 = vmatpush1.bf16.msra.mxu0 %v722
    %788 = vmatprep.subr.bf16.mxu0 %v725
    %789 = vmatpush1.bf16.msra.mxu0 %v724
    %790 = vmatprep.subr.bf16.mxu0 %v727
    %791 = vmatpush1.bf16.msra.mxu0 %v726
    %792 = vmatprep.subr.bf16.mxu0 %v729
    %793 = vmatpush1.bf16.msra.mxu0 %v728
    %794 = vmatprep.subr.bf16.mxu0 %v731
    %795 = vmatpush1.bf16.msra.mxu0 %v730
    %796 = vmatprep.subr.bf16.mxu0 %v733
    %797 = vmatpush1.bf16.msra.mxu0 %v732
    %798 = vmatprep.subr.bf16.mxu0 %v735
    %799 = vmatpush1.bf16.msra.mxu0 %v734
    %800 = vmatprep.subr.bf16.mxu0 %v737
    %801 = vmatpush1.bf16.msra.mxu0 %v736
    %802 = vmatprep.subr.bf16.mxu0 %v739
    %803 = vmatpush1.bf16.msra.mxu0 %v738
    %804 = vmatprep.subr.bf16.mxu0 %v741
    %805 = vmatpush1.bf16.msra.mxu0 %v740
    %806 = vmatprep.subr.bf16.mxu0 %v743
    %807 = vmatpush1.bf16.msra.mxu0 %v742
    %808 = vmatprep.subr.bf16.mxu0 %v745
    %809 = vmatpush1.bf16.msra.mxu0 %v744
    %810 = vmatprep.subr.bf16.mxu0 %v747
    %811 = vmatpush1.bf16.msra.mxu0 %v746
    %812 = vmatprep.subr.bf16.mxu0 %v749
    %813 = vmatpush1.bf16.msra.mxu0 %v748
    %814 = vmatprep.subr.bf16.mxu0 %v751
    %815 = vmatpush1.bf16.msra.mxu0 %v750
    %816 = vmatprep.mubr.bf16.mxu0 %v590
    %817 = vmatmul.mubr.bf16.gmra.mrb[0].mxu0 %v589
    %v818 = vpop.f32.mrb[0].mxu0
    %v819 = vadd.f32 0.0, %v818
    %v820 = vpop.f32.mrb[0].mxu0
    %v821 = vadd.f32 0.0, %v820
    %v822 = vpop.f32.mrb[0].mxu0
    %v823 = vpop.f32.mrb[0].mxu0
    %824 = vdwg.mxu0
    %v825 = vrot.slane %v819, 4
    %v826 = vadd.f32 %v819, %v825
    %v827 = vrot.slane %v826, 2
    %v828 = vadd.f32 %v826, %v827
    %v829 = vrot.slane %v828, 1
    %v830 = vadd.f32 %v828, %v829
    %v831 = vrot.slane %v821, 4
    %v832 = vadd.f32 %v821, %v831
    %v833 = vrot.slane %v832, 2
    %v834 = vadd.f32 %v832, %v833
    %v835 = vrot.slane %v834, 1
    %v836 = vadd.f32 %v834, %v835
    %v837 = vmul.f32 %v819, %v819
    %v838 = vmul.f32 %v821, %v821
    %v839 = vrot.slane %v837, 4
    %v840 = vadd.f32 %v837, %v839
    %v841 = vrot.slane %v840, 2
    %v842 = vadd.f32 %v840, %v841
    %v843 = vrot.slane %v842, 1
    %v844 = vadd.f32 %v842, %v843
    %v845 = vrot.slane %v838, 4
    %v846 = vadd.f32 %v838, %v845
    %v847 = vrot.slane %v846, 2
    %v848 = vadd.f32 %v846, %v847
    %v849 = vrot.slane %v848, 1
    %v850 = vadd.f32 %v848, %v849
    %v851 = vmul.f32 %v830, 0.125
    %v852 = vmul.f32 %v836, 0.125
    %v853 = vmul.f32 %v844, 0.125
    %v854 = vmul.f32 %v850, 0.125
    %v855 = vmul.f32 %v851, %v851
    %v856 = vmul.f32 %v852, %v852
    %v857 = vsub.f32 %v853, %v855
    %v858 = vsub.f32 %v854, %v856
    %v859 = vmax.f32 %v857, 0.0
    %v860 = vmax.f32 %v858, 0.0
    %v861 = vadd.f32 %v859, 1e-05
    %v862 = vadd.f32 %v860, 1e-05
    %v863 = vrsqrt.pop %v861
    %v864 = vrsqrt.pop %v862
    %v865 = vmul.f32 %v66, %v863
    %v866 = vmul.f32 %v67, %v864
    %v867 = vmul.f32 %v851, %v865
    %v868 = vmul.f32 %v852, %v866
    %v871 = vrot.slane %v867, 7
    %v872 = vrot.slane %v868, 7
    %v875 = vsub.f32 %v66, %v871
    %v876 = vsub.f32 %v67, %v872
    %v877 = vlaneseq
    %v878 = vshrl.u32 %v877, 7
    %v879 = vsub.s32 4, %v878
    %v880 = vrot.slane %v865, %v879
    %v881 = vlaneseq
    %v882 = vshrl.u32 %v881, 7
    %v883 = vsub.s32 4, %v882
    %v884 = vrot.slane %v866, %v883
    %v885 = vmul.f32 %v819, %v880
    %v886 = vmul.f32 %v821, %v884
    %v887 = vlaneseq
    %v888 = vshrl.u32 %v887, 7
    %v889 = vsub.s32 5, %v888
    %v890 = vrot.slane %v875, %v889
    %v891 = vlaneseq
    %v892 = vshrl.u32 %v891, 7
    %v893 = vsub.s32 5, %v892
    %v894 = vrot.slane %v876, %v893
    %v895 = vadd.f32 %v885, %v890
    %v896 = vadd.f32 %v886, %v894
    %v897 = vmax.f32 %v895, 0.0
    %v898 = vmax.f32 %v896, 0.0
    %v899 = vpack.c.bf16 %v897, %v897
    %v900 = vpack.c.bf16 %v898, %v898
    %v901 = vld [vmem:[#allocation7] sm:$0xf]
    %v902 = vld [vmem:[#allocation7 + $0x4] sm:$0xf]
    %v903 = vld [vmem:[#allocation7 + $0x8] sm:$0xf]
    %v904 = vld [vmem:[#allocation7 + $0xc] sm:$0xf]
    %v905 = vld [vmem:[#allocation7 + $0x10] sm:$0xf]
    %v906 = vld [vmem:[#allocation7 + $0x14] sm:$0xf]
    %v907 = vld [vmem:[#allocation7 + $0x18] sm:$0xf]
    %v908 = vld [vmem:[#allocation7 + $0x1c] sm:$0xf]
    %v909 = vld [vmem:[#allocation7 + $0x20] sm:$0xf]
    %v910 = vld [vmem:[#allocation7 + $0x24] sm:$0xf]
    %v911 = vld [vmem:[#allocation7 + $0x28] sm:$0xf]
    %v912 = vld [vmem:[#allocation7 + $0x2c] sm:$0xf]
    %v913 = vld [vmem:[#allocation7 + $0x30] sm:$0xf]
    %v914 = vld [vmem:[#allocation7 + $0x34] sm:$0xf]
    %v915 = vld [vmem:[#allocation7 + $0x38] sm:$0xf]
    %v916 = vld [vmem:[#allocation7 + $0x3c] sm:$0xf]
    %v917 = vld [vmem:[#allocation7 + $0x40] sm:$0xf]
    %v918 = vld [vmem:[#allocation7 + $0x44] sm:$0xf]
    %v919 = vld [vmem:[#allocation7 + $0x48] sm:$0xf]
    %v920 = vld [vmem:[#allocation7 + $0x4c] sm:$0xf]
    %v921 = vld [vmem:[#allocation7 + $0x50] sm:$0xf]
    %v922 = vld [vmem:[#allocation7 + $0x54] sm:$0xf]
    %v923 = vld [vmem:[#allocation7 + $0x58] sm:$0xf]
    %v924 = vld [vmem:[#allocation7 + $0x5c] sm:$0xf]
    %v925 = vld [vmem:[#allocation7 + $0x60] sm:$0xf]
    %v926 = vld [vmem:[#allocation7 + $0x64] sm:$0xf]
    %v927 = vld [vmem:[#allocation7 + $0x68] sm:$0xf]
    %v928 = vld [vmem:[#allocation7 + $0x6c] sm:$0xf]
    %v929 = vld [vmem:[#allocation7 + $0x70] sm:$0xf]
    %v930 = vld [vmem:[#allocation7 + $0x74] sm:$0xf]
    %v931 = vld [vmem:[#allocation7 + $0x78] sm:$0xf]
    %v932 = vld [vmem:[#allocation7 + $0x7c] sm:$0xf]
    %v933 = vld [vmem:[%s5] sm:$0x1]
    %v935 = vlaneseq
    %v936 = vshrl.u32 %v935, 7
    %v937 = vsub.s32 0, %v936
    %v938 = vrot.slane %v933, %v937
    %v972 = vunpack.c.l.b16 %v901
    %v973 = vunpack.c.l.b16 %v902
    %v974 = vunpack.c.l.b16 %v903
    %v975 = vunpack.c.l.b16 %v904
    %v976 = vunpack.c.l.b16 %v905
    %v977 = vunpack.c.l.b16 %v906
    %v978 = vunpack.c.l.b16 %v907
    %v979 = vunpack.c.l.b16 %v908
    %v980 = vunpack.c.l.b16 %v909
    %v981 = vunpack.c.l.b16 %v910
    %v982 = vunpack.c.l.b16 %v911
    %v983 = vunpack.c.l.b16 %v912
    %v984 = vunpack.c.l.b16 %v913
    %v985 = vunpack.c.l.b16 %v914
    %v986 = vunpack.c.l.b16 %v915
    %v987 = vunpack.c.l.b16 %v916
    %v988 = vunpack.c.l.b16 %v917
    %v989 = vunpack.c.l.b16 %v918
    %v990 = vunpack.c.l.b16 %v919
    %v991 = vunpack.c.l.b16 %v920
    %v992 = vunpack.c.l.b16 %v921
    %v993 = vunpack.c.l.b16 %v922
    %v994 = vunpack.c.l.b16 %v923
    %v995 = vunpack.c.l.b16 %v924
    %v996 = vunpack.c.l.b16 %v925
    %v997 = vunpack.c.l.b16 %v926
    %v998 = vunpack.c.l.b16 %v927
    %v999 = vunpack.c.l.b16 %v928
    %v1000 = vunpack.c.l.b16 %v929
    %v1001 = vunpack.c.l.b16 %v930
    %v1002 = vunpack.c.l.b16 %v931
    %v1003 = vunpack.c.l.b16 %v932
    %v1004 = vpack.c.b16 %v973, %v972
    %v1005 = vpack.c.b16 %v975, %v974
    %v1006 = vpack.c.b16 %v977, %v976
    %v1007 = vpack.c.b16 %v979, %v978
    %v1008 = vpack.c.b16 %v981, %v980
    %v1009 = vpack.c.b16 %v983, %v982
    %v1010 = vpack.c.b16 %v985, %v984
    %v1011 = vpack.c.b16 %v987, %v986
    %v1012 = vpack.c.b16 %v989, %v988
    %v1013 = vpack.c.b16 %v991, %v990
    %v1014 = vpack.c.b16 %v993, %v992
    %v1015 = vpack.c.b16 %v995, %v994
    %v1016 = vpack.c.b16 %v997, %v996
    %v1017 = vpack.c.b16 %v999, %v998
    %v1018 = vpack.c.b16 %v1001, %v1000
    %v1019 = vpack.c.b16 %v1003, %v1002
    %1036 = vmatprep.subr.bf16.mxu0 0
    %1037 = vmatpush1.bf16.msra.mxu0 %v1004
    %1038 = vmatprep.subr.bf16.mxu0 0
    %1039 = vmatpush1.bf16.msra.mxu0 %v1005
    %1040 = vmatprep.subr.bf16.mxu0 0
    %1041 = vmatpush1.bf16.msra.mxu0 %v1006
    %1042 = vmatprep.subr.bf16.mxu0 0
    %1043 = vmatpush1.bf16.msra.mxu0 %v1007
    %1044 = vmatprep.subr.bf16.mxu0 0
    %1045 = vmatpush1.bf16.msra.mxu0 %v1008
    %1046 = vmatprep.subr.bf16.mxu0 0
    %1047 = vmatpush1.bf16.msra.mxu0 %v1009
    %1048 = vmatprep.subr.bf16.mxu0 0
    %1049 = vmatpush1.bf16.msra.mxu0 %v1010
    %1050 = vmatprep.subr.bf16.mxu0 0
    %1051 = vmatpush1.bf16.msra.mxu0 %v1011
    %1052 = vmatprep.subr.bf16.mxu0 0
    %1053 = vmatpush1.bf16.msra.mxu0 %v1012
    %1054 = vmatprep.subr.bf16.mxu0 0
    %1055 = vmatpush1.bf16.msra.mxu0 %v1013
    %1056 = vmatprep.subr.bf16.mxu0 0
    %1057 = vmatpush1.bf16.msra.mxu0 %v1014
    %1058 = vmatprep.subr.bf16.mxu0 0
    %1059 = vmatpush1.bf16.msra.mxu0 %v1015
    %1060 = vmatprep.subr.bf16.mxu0 0
    %1061 = vmatpush1.bf16.msra.mxu0 %v1016
    %1062 = vmatprep.subr.bf16.mxu0 0
    %1063 = vmatpush1.bf16.msra.mxu0 %v1017
    %1064 = vmatprep.subr.bf16.mxu0 0
    %1065 = vmatpush1.bf16.msra.mxu0 %v1018
    %1066 = vmatprep.subr.bf16.mxu0 0
    %1067 = vmatpush1.bf16.msra.mxu0 %v1019
    %1068 = vmatprep.mubr.bf16.mxu0 %v900
    %1069 = vmatmul.mubr.bf16.gmra.mrb[0].mxu0 %v899
    %v1070 = vpop.f32.mrb[0].mxu0
    %v1071 = vadd.f32 %v938, %v1070
    %v1072 = vpop.f32.mrb[0].mxu0
    %v1073 = vpop.f32.mrb[0].mxu0
    %v1074 = vpop.f32.mrb[0].mxu0
    %1075 = vdwg.mxu0
    %1076 = vst [vmem:[#allocation8] sm:$0xff] %v1071
    // Predicated region
    $region38: #{mlp_forward.1} parent=1 // pred_check
      _
    $region39: #{mlp_forward.1} parent=1 // pred_check_branch
      %1078 = sbr.rel (0) target = $region41
    $region40: #{mlp_forward.1} parent=1 // pred_region
      %s1080 = ssub.s32 128, 128
      %1081 = vsyncadd [#allocation4], %s1080
      %s1083 = sshll.u32 [#allocation8], 4
      %s1084 = int_to_ptr.vmem [resolvable:$true] %s1083
      %1086 = dma.vmem_to_hbm [thread:$0]  %s1084, 128, %s6, [#allocation4]
    $region41: #{mlp_forward.1} parent=1 // pred_fallthru
      _
    // Predicated region
    $region42: #{mlp_forward.1} parent=1 // pred_check
      _
    $region43: #{mlp_forward.1} parent=1 // pred_check_branch
      %1088 = sbr.rel (0) target = $region45
    $region44: #{mlp_forward.1} parent=1 // pred_region
      %1089 = dma.done [#allocation4], 128
    $region45: #{mlp_forward.1} parent=1 // pred_fallthru
      _
    %1090 = vsyncpa [#allocation3], 1
    %1091 = vsyncpa [#allocation6], 1
    %1092 = vsyncpa [#allocation4], 1

</llo_original>
